<compile_context>
chip_gen: v7x
topology: tpu7x:2x2x1
jax: 0.10.0
libtpu: 0.0.40
codegen_flags: <defaults>
</compile_context>

<pallas_src>
import jax
import jax.numpy as jnp
from jax.experimental import pallas as pl
from jax.experimental.pallas import tpu as pltpu

_LN2 = 0.6931471805599453

# Whole-tensor-in-one-block threshold (input + output comfortably fit VMEM on
# every TPU generation, including v7x's smaller VMEM).
_SINGLE_BLOCK_BYTES = 2 * 1024 * 1024
# Target block size for the tiled (large-tensor) path.
_TARGET_BLOCK_BYTES = 2 * 1024 * 1024


def _activate_kernel(x_ref, o_ref):
    x = x_ref[...]
    y = 2.0 * x.astype(jnp.float32)
    # numerically stable softplus: max(y, 0) + log1p(exp(-|y|))
    sp = jnp.maximum(y, 0.0) + jnp.log1p(jnp.exp(-jnp.abs(y)))
    o_ref[...] = ((sp - _LN2) * 0.5).astype(o_ref.dtype)


def activate_f(x):
    """Elementwise (softplus(2x) - ln2)/2 via a Pallas TPU kernel."""
    orig_shape = x.shape
    orig_dtype = x.dtype
    total = x.size
    itemsize = jnp.dtype(orig_dtype).itemsize
    nbytes = total * itemsize

    # Widest lane-dense layout that divides the element count exactly
    # (=> no wrapper-side pad/slice copies in the common case).
    lanes = 128
    for cand in (1024, 512, 256, 128):
        if total % cand == 0:
            lanes = cand
            break

    # ---- Small path: whole tensor as ONE VMEM block, no grid, no padding ----
    if total % lanes == 0 and nbytes <= _SINGLE_BLOCK_BYTES:
        rows = total // lanes
        x2d = x.reshape(rows, lanes)
        out2d = pl.pallas_call(
            _activate_kernel,
            out_shape=jax.ShapeDtypeStruct((rows, lanes), orig_dtype),
        )(x2d)
        return out2d.reshape(orig_shape)

    # ---- Large / ragged path: big lane-dense blocks, parallel grid ----
    rows = pl.cdiv(total, lanes)
    block_rows = max(8, (_TARGET_BLOCK_BYTES // (lanes * itemsize)) // 8 * 8)
    # Don't make the block (much) larger than the data itself.
    block_rows = min(block_rows, pl.cdiv(rows, 8) * 8)

    rows_padded = pl.cdiv(rows, block_rows) * block_rows
    padded_total = rows_padded * lanes

    x_flat = x.reshape(-1)
    if padded_total != total:
        # Only taken for ragged remainders; common shapes divide exactly.
        x_flat = jnp.pad(x_flat, (0, padded_total - total))
    x2d = x_flat.reshape(rows_padded, lanes)

    grid = (rows_padded // block_rows,)
    out2d = pl.pallas_call(
        _activate_kernel,
        out_shape=jax.ShapeDtypeStruct((rows_padded, lanes), orig_dtype),
        grid_spec=pltpu.PrefetchScalarGridSpec(
            num_scalar_prefetch=0,
            grid=grid,
            in_specs=[pl.BlockSpec((block_rows, lanes), lambda i: (i, 0))],
            out_specs=pl.BlockSpec((block_rows, lanes), lambda i: (i, 0)),
        ),
        compiler_params=pltpu.CompilerParams(
            dimension_semantics=("parallel",)),
    )(x2d)

    if padded_total != total:
        return out2d.reshape(-1)[:total].reshape(orig_shape)
    return out2d.reshape(orig_shape)


def _reference(x):
    # Pure-JAX reference mirroring torch: (F.softplus(2x) - ln2) / 2
    y = 2.0 * x
    sp = jnp.maximum(y, 0.0) + jnp.log1p(jnp.exp(-jnp.abs(y)))
    return (sp - _LN2) / 2.0


if __name__ == "__main__":
    key = jax.random.PRNGKey(0)

    # Module's input: NCHW (2, 4, 16, 16) -> exercises the single-block path.
    x = jax.random.normal(key, (2, 4, 16, 16), dtype=jnp.float32)
    out = jax.block_until_ready(activate_f(x))
    ref = _reference(x)
    assert out.shape == x.shape and out.dtype == x.dtype
    assert jnp.allclose(out, ref, atol=1e-6, rtol=1e-6)

    # Secondary check: a larger tensor that exercises the tiled path
    # (including the ragged/padded remainder handling).
    x_big = jax.random.normal(jax.random.PRNGKey(1), (4, 8, 128, 130),
                              dtype=jnp.float32)
    out_big = jax.block_until_ready(activate_f(x_big))
    ref_big = _reference(x_big)
    assert out_big.shape == x_big.shape and out_big.dtype == x_big.dtype
    assert jnp.allclose(out_big, ref_big, atol=1e-6, rtol=1e-6)

    print("KERNEL_OK")
</pallas_src>

<mosaic_0001>
module attributes {stable_mosaic.version = 11 : i64} {
  func.func @_activate_kernel(%arg0: memref<2x1024xf32, #tpu.memory_space<vmem>>, %arg1: memref<2x1024xf32, #tpu.memory_space<vmem>>) attributes {dimension_semantics = [], scalar_prefetch = 0 : i64, scratch_operands = 0 : i64, tpu.core_type = #tpu.core_type<tc>} {
    %c0 = arith.constant 0 : index
    %c0_0 = arith.constant 0 : index
    %0 = vector.load %arg0[%c0, %c0_0] : memref<2x1024xf32, #tpu.memory_space<vmem>>, vector<2x1024xf32>
    %cst = arith.constant 2.000000e+00 : f32
    %1 = vector.broadcast %cst : f32 to vector<2x1024xf32>
    %2 = arith.mulf %1, %0 : vector<2x1024xf32>
    %cst_1 = arith.constant 0.000000e+00 : f32
    %3 = vector.broadcast %cst_1 : f32 to vector<2x1024xf32>
    %4 = arith.maximumf %2, %3 : vector<2x1024xf32>
    %5 = math.absf %2 : vector<2x1024xf32>
    %cst_2 = arith.constant 0.000000e+00 : f32
    %6 = vector.broadcast %cst_2 : f32 to vector<2x1024xf32>
    %7 = arith.subf %6, %5 : vector<2x1024xf32>
    %8 = math.exp %7 : vector<2x1024xf32>
    %9 = math.log1p %8 : vector<2x1024xf32>
    %10 = arith.addf %4, %9 : vector<2x1024xf32>
    %cst_3 = arith.constant 0.693147182 : f32
    %11 = vector.broadcast %cst_3 : f32 to vector<2x1024xf32>
    %12 = arith.subf %10, %11 : vector<2x1024xf32>
    %cst_4 = arith.constant 5.000000e-01 : f32
    %13 = vector.broadcast %cst_4 : f32 to vector<2x1024xf32>
    %14 = arith.mulf %12, %13 : vector<2x1024xf32>
    %c0_5 = arith.constant 0 : index
    %c0_6 = arith.constant 0 : index
    %15 = vector.load %arg1[%c0_5, %c0_6] : memref<2x1024xf32, #tpu.memory_space<vmem>>, vector<2x1024xf32>
    tpu.vector_store %arg1[%c0_5, %c0_6], %14 {strides = array<i32>} : memref<2x1024xf32, #tpu.memory_space<vmem>>, vector<2x1024xf32>,
    return
  }
}

</mosaic_0001>

<llo_original>
// kernel: tpu_custom_call.1
$region0: #{tpu_custom_call.1}
  #allocation0 [shape = 'u32[]', space=smem, size = 0x4, offset = 0x4, fixed_abs, tag = 'smem constant byte address 0x4 - core index']
  #allocation1 [shape = 'u32[144,128]{1,0:T(1,128)}', space=vmem, size = 0x12000, scoped, tag = 'internal scratch']
  %s0 = inlined_call_operand.hbm [shape: f32[2,1024], index: 0, kind: input, shape index: {}]
  %s1 = inlined_call_operand.hbm [shape: f32[2,1024], index: 1, kind: output, shape index: {}]
  %s2 = sld [smem:[#allocation0]]
  $region18: #{tpu_custom_call.1} parent=0
    _
  %s4 = ssub.s32 1, %s2
  %s5 = scalar_select 0, %s4, %s2
  $region1: #{tpu_custom_call.1} parent=0
    #allocation2 [shape = 'u8[8192]{0}', space=vmem, size = 0x2000, scoped, tag = 'input window, operand 0, single buffered']
    #allocation3 [shape = 's32[1]{0}', space=sflag, size = 0x4, scoped, tag = 'scoped memory for tpu_custom_call.1']
    #allocation4 [shape = 's32[1]{0}', space=sflag, size = 0x4, scoped, tag = 'scoped memory for tpu_custom_call.1']
    #allocation5 [shape = 'u8[8192]{0}', space=vmem, size = 0x2000, scoped, tag = 'output window, operand 0, single buffered']
    %6 = vsyncpa [#allocation3], 0
    %7 = vsyncpa [#allocation4], 0
    // Predicated region
    $region2: #{tpu_custom_call.1} parent=1 // pred_check
      _
    $region3: #{tpu_custom_call.1} parent=1 // pred_check_branch
      %9 = sbr.rel (0) target = $region5
    $region4: #{tpu_custom_call.1} parent=1 // pred_region
      %s11 = ssub.s32 256, 256
      %12 = vsyncadd [#allocation3], %s11
      %s14 = sshll.u32 [#allocation2], 4
      %s15 = int_to_ptr.vmem [resolvable:$true] %s14
      %17 = dma.hbm_to_vmem [thread:$0]  %s0, 256, %s15, [#allocation3]
    $region5: #{tpu_custom_call.1} parent=1 // pred_fallthru
      _
    // Predicated region
    $region6: #{tpu_custom_call.1} parent=1 // pred_check
      _
    $region7: #{tpu_custom_call.1} parent=1 // pred_check_branch
      %19 = sbr.rel (0) target = $region9
    $region8: #{tpu_custom_call.1} parent=1 // pred_region
      %20 = dma.done [#allocation3], 256
    $region9: #{tpu_custom_call.1} parent=1 // pred_fallthru
      _
    %v21 = vld [vmem:[#allocation2] sm:$0xff]
    %v22 = vld [vmem:[#allocation2 + $0x8] sm:$0xff]
    %v23 = vmul.f32 %v21, 2.0
    %v24 = vmul.f32 %v22, 2.0
    %v25 = vmax.f32 %v23, 0.0
    %v26 = vmax.f32 %v24, 0.0
    %v27 = vand.u32 2147483647, %v23
    %v28 = vand.u32 2147483647, %v24
    %v29 = vsub.f32 0.0, %v27
    %v30 = vsub.f32 0.0, %v28
    %v31 = vmul.f32 %v29, 1.442695
    %v32 = vpow.pop %v31
    %v33 = vmul.f32 %v30, 1.442695
    %v34 = vpow.pop %v33
    %v35 = vadd.f32 %v32, 1.0
    %v36 = vlog2.pop %v35
    %v37 = vmul.f32 %v36, 0.6931472
    %v38 = vmul.f32 -0.5, %v32
    %v39 = vadd.f32 %v38, 1.0
    %v40 = vmul.f32 %v39, %v32
    %v41 = vand.u32 2147483647, %v32
    %vm42 = vcmp.lt.f32.partialorder %v41, 0.0004427343
    %v43 = vsel %vm42, %v40, %v37
    %v44 = vadd.f32 %v34, 1.0
    %v45 = vlog2.pop %v44
    %v46 = vmul.f32 %v45, 0.6931472
    %v47 = vmul.f32 -0.5, %v34
    %v48 = vadd.f32 %v47, 1.0
    %v49 = vmul.f32 %v48, %v34
    %v50 = vand.u32 2147483647, %v34
    %vm51 = vcmp.lt.f32.partialorder %v50, 0.0004427343
    %v52 = vsel %vm51, %v49, %v46
    %v53 = vadd.f32 %v25, %v43
    %v54 = vadd.f32 %v26, %v52
    %v55 = vsub.f32 %v53, 0.6931472
    %v56 = vsub.f32 %v54, 0.6931472
    %v57 = vmul.f32 %v55, 0.5
    %v58 = vmul.f32 %v56, 0.5
    %59 = vst [vmem:[#allocation5] sm:$0xff] %v57
    %60 = vst [vmem:[#allocation5 + $0x8] sm:$0xff] %v58
    // Predicated region
    $region10: #{tpu_custom_call.1} parent=1 // pred_check
      _
    $region11: #{tpu_custom_call.1} parent=1 // pred_check_branch
      %62 = sbr.rel (0) target = $region13
    $region12: #{tpu_custom_call.1} parent=1 // pred_region
      %s64 = ssub.s32 256, 256
      %65 = vsyncadd [#allocation4], %s64
      %s67 = sshll.u32 [#allocation5], 4
      %s68 = int_to_ptr.vmem [resolvable:$true] %s67
      %70 = dma.vmem_to_hbm [thread:$0]  %s68, 256, %s1, [#allocation4]
    $region13: #{tpu_custom_call.1} parent=1 // pred_fallthru
      _
    // Predicated region
    $region14: #{tpu_custom_call.1} parent=1 // pred_check
      _
    $region15: #{tpu_custom_call.1} parent=1 // pred_check_branch
      %72 = sbr.rel (0) target = $region17
    $region16: #{tpu_custom_call.1} parent=1 // pred_region
      %73 = dma.done [#allocation4], 256
    $region17: #{tpu_custom_call.1} parent=1 // pred_fallthru
      _
    %74 = vsyncpa [#allocation3], 1
    %75 = vsyncpa [#allocation4], 1

</llo_original>
